<compile_context>
chip_gen: v7x
topology: tpu7x:2x2x1
jax: 0.10.0
libtpu: 0.0.40
codegen_flags: <defaults>
</compile_context>

<pallas_src>
import jax
import jax.numpy as jnp
from jax.experimental import pallas as pl
from jax.experimental.pallas import tpu as pltpu


def _multiclass_kernel(w1_ref, b1_ref, w2_ref, b2_ref, x_ref, o_ref):
    # Per grid step:
    #   w1_ref: (4, 8) SMEM    b1_ref: (8,) SMEM
    #   w2_ref: (8, 3) SMEM    b2_ref: (3,) SMEM
    #   x_ref : (4, TR, 128) VMEM   o_ref: (3, TR, 128) VMEM
    # Batch lives on (sublane-block, lane) = (TR, 128): every elementwise op
    # below runs on fully-occupied vregs.
    x0 = x_ref[0]
    x1 = x_ref[1]
    x2 = x_ref[2]
    x3 = x_ref[3]

    # Layer 1: hidden_j = relu(sum_i w1[i, j] * x_i + b1[j])
    hidden = []
    for j in range(8):
        acc = (x0 * w1_ref[0, j] + x1 * w1_ref[1, j]
               + x2 * w1_ref[2, j] + x3 * w1_ref[3, j])
        hidden.append(jnp.maximum(acc + b1_ref[j], 0.0))

    # Layer 2: logits_k = sum_j w2[j, k] * hidden_j + b2[k]
    logits = []
    for k in range(3):
        acc = hidden[0] * w2_ref[0, k]
        for j in range(1, 8):
            acc = acc + hidden[j] * w2_ref[j, k]
        logits.append(acc + b2_ref[k])

    # Numerically-stable log-softmax over the 3 class planes (VPU + EUP).
    m = jnp.maximum(jnp.maximum(logits[0], logits[1]), logits[2])
    s0 = logits[0] - m
    s1 = logits[1] - m
    s2 = logits[2] - m
    lse = jnp.log(jnp.exp(s0) + jnp.exp(s1) + jnp.exp(s2))

    o_ref[0] = s0 - lse
    o_ref[1] = s1 - lse
    o_ref[2] = s2 - lse


def multiclass_forward(x, w1, b1, w2, b2, *, block_rows=512):
    """x: (B, 4) f32; w1: (4, 8); b1: (8,); w2: (8, 3); b2: (3,).

    Returns (B, 3) f32 log-probabilities (== PyTorch Multiclass.forward).
    `block_rows` = sublane-blocks of 128 samples processed per grid step.
    """
    B = x.shape[0]
    n128 = pl.cdiv(B, 128)       # number of 128-sample lane groups
    b_pad = n128 * 128

    # Lane-dense layout: batch on the lane axis, then a free reshape to
    # (feat, sublane-blocks, 128 lanes).
    x_t = x.T                                            # (4, B)
    if b_pad != B:
        x_t = jnp.pad(x_t, ((0, 0), (0, b_pad - B)))     # <=127-lane tail pad
    x3d = x_t.reshape(4, n128, 128)

    # Row-tile selection: large tiles to amortize per-step overhead, but prefer
    # >= 2 grid blocks when there is enough work so both v7x TensorCores get a
    # share ("parallel" grid axis).  TR must be a multiple of 8 unless it spans
    # the whole axis; a ragged last block is handled by Pallas masking.
    tr = int(block_rows)
    if n128 >= 16 and tr > (n128 + 1) // 2:
        tr = (n128 + 1) // 2
    if tr >= n128:
        tr = n128
    else:
        tr = max(8, (tr // 8) * 8)
    n_blocks = pl.cdiv(n128, tr)

    smem = pl.BlockSpec(memory_space=pltpu.MemorySpace.SMEM)

    out3d = pl.pallas_call(
        _multiclass_kernel,
        out_shape=jax.ShapeDtypeStruct((3, n128, 128), jnp.float32),
        grid_spec=pltpu.PrefetchScalarGridSpec(
            num_scalar_prefetch=0,
            grid=(n_blocks,),
            in_specs=[
                smem,  # w1 (4, 8)
                smem,  # b1 (8,)
                smem,  # w2 (8, 3)
                smem,  # b2 (3,)
                pl.BlockSpec((4, tr, 128), lambda i: (0, i, 0)),  # x tile
            ],
            out_specs=pl.BlockSpec((3, tr, 128), lambda i: (0, i, 0)),
        ),
        compiler_params=pltpu.CompilerParams(
            dimension_semantics=("parallel",),
            # Explicit scoped-VMEM budget: covers double-buffered I/O tiles plus
            # elementwise intermediates at TR=512 (~10 MiB) with headroom; safe
            # on v5e (16 MiB default scoped), v6e (128 MiB) and v7x (64 MiB).
            vmem_limit_bytes=48 * 1024 * 1024,
        ),
        cost_estimate=pl.CostEstimate(
            flops=131 * b_pad,
            transcendentals=4 * b_pad,
            bytes_accessed=28 * b_pad,
        ),
    )(w1, b1, w2, b2, x3d)

    return out3d.reshape(3, b_pad)[:, :B].T  # (B, 3)


def _ref_forward(x, w1, b1, w2, b2):
    h = jnp.maximum(x @ w1 + b1, 0.0)
    logits = h @ w2 + b2
    return jax.nn.log_softmax(logits, axis=1)


if __name__ == "__main__":
    key = jax.random.PRNGKey(0)
    k_x, k_w1, k_b1, k_w2, k_b2, k_x2 = jax.random.split(key, 6)

    # Module shapes: hidden Linear(4, 8) -> w1 (4, 8) [input-major], b1 (8,)
    #                output Linear(8, 3) -> w2 (8, 3) [input-major], b2 (3,)
    batch = 8
    x = jax.random.normal(k_x, (batch, 4), dtype=jnp.float32)
    w1 = jax.random.normal(k_w1, (4, 8), dtype=jnp.float32) * 0.5
    b1 = jax.random.normal(k_b1, (8,), dtype=jnp.float32) * 0.1
    w2 = jax.random.normal(k_w2, (8, 3), dtype=jnp.float32) * 0.5
    b2 = jax.random.normal(k_b2, (3,), dtype=jnp.float32) * 0.1

    out = multiclass_forward(x, w1, b1, w2, b2)
    jax.block_until_ready(out)
    ref = _ref_forward(x, w1, b1, w2, b2)
    assert out.shape == (batch, 3)
    assert jnp.allclose(out, ref, atol=1e-5, rtol=1e-5)

    # Second check: multi-block grid with a ragged last block (1300 samples ->
    # 11 lane groups, tiles of 8 -> blocks of 8 and 3) plus the lane-tail pad.
    x_big = jax.random.normal(k_x2, (1300, 4), dtype=jnp.float32)
    out_big = multiclass_forward(x_big, w1, b1, w2, b2, block_rows=8)
    jax.block_until_ready(out_big)
    ref_big = _ref_forward(x_big, w1, b1, w2, b2)
    assert out_big.shape == (1300, 3)
    assert jnp.allclose(out_big, ref_big, atol=1e-5, rtol=1e-5)

    print("KERNEL_OK")
</pallas_src>

<mosaic_0001>
module attributes {stable_mosaic.version = 11 : i64} {
  func.func @_multiclass_kernel(%arg0: i32, %arg1: memref<4x8xf32, #tpu.memory_space<smem>>, %arg2: memref<8xf32, #tpu.memory_space<smem>>, %arg3: memref<8x3xf32, #tpu.memory_space<smem>>, %arg4: memref<3xf32, #tpu.memory_space<smem>>, %arg5: memref<4x1x128xf32, #tpu.memory_space<vmem>>, %arg6: memref<3x1x128xf32, #tpu.memory_space<vmem>>) attributes {dimension_semantics = [#tpu.dimension_semantics<parallel>], iteration_bounds = array<i64: 1>, scalar_prefetch = 0 : i64, scratch_operands = 0 : i64, tpu.core_type = #tpu.core_type<tc>, window_params = [{transform_indices = @transform_0, window_bounds = array<i64: 4, 8>}, {transform_indices = @transform_1, window_bounds = array<i64: 8>}, {transform_indices = @transform_2, window_bounds = array<i64: 8, 3>}, {transform_indices = @transform_3, window_bounds = array<i64: 3>}, {transform_indices = @transform_4, window_bounds = array<i64: 4, 1, 128>}, {transform_indices = @transform_5, window_bounds = array<i64: 3, 1, 128>}]} {
    %c0 = arith.constant 0 : index
    %c0_0 = arith.constant 0 : index
    %c0_1 = arith.constant 0 : index
    %0 = vector.load %arg5[%c0, %c0_0, %c0_1] : memref<4x1x128xf32, #tpu.memory_space<vmem>>, vector<1x1x128xf32>
    %1 = vector.shape_cast %0 : vector<1x1x128xf32> to vector<1x128xf32>
    %c1 = arith.constant 1 : index
    %c0_2 = arith.constant 0 : index
    %c0_3 = arith.constant 0 : index
    %2 = vector.load %arg5[%c1, %c0_2, %c0_3] : memref<4x1x128xf32, #tpu.memory_space<vmem>>, vector<1x1x128xf32>
    %3 = vector.shape_cast %2 : vector<1x1x128xf32> to vector<1x128xf32>
    %c2 = arith.constant 2 : index
    %c0_4 = arith.constant 0 : index
    %c0_5 = arith.constant 0 : index
    %4 = vector.load %arg5[%c2, %c0_4, %c0_5] : memref<4x1x128xf32, #tpu.memory_space<vmem>>, vector<1x1x128xf32>
    %5 = vector.shape_cast %4 : vector<1x1x128xf32> to vector<1x128xf32>
    %c3 = arith.constant 3 : index
    %c0_6 = arith.constant 0 : index
    %c0_7 = arith.constant 0 : index
    %6 = vector.load %arg5[%c3, %c0_6, %c0_7] : memref<4x1x128xf32, #tpu.memory_space<vmem>>, vector<1x1x128xf32>
    %7 = vector.shape_cast %6 : vector<1x1x128xf32> to vector<1x128xf32>
    %c0_8 = arith.constant 0 : index
    %c0_9 = arith.constant 0 : index
    %8 = memref.load %arg1[%c0_8, %c0_9] : memref<4x8xf32, #tpu.memory_space<smem>>
    %9 = vector.broadcast %8 : f32 to vector<1x128xf32>
    %10 = arith.mulf %1, %9 : vector<1x128xf32>
    %c1_10 = arith.constant 1 : index
    %c0_11 = arith.constant 0 : index
    %11 = memref.load %arg1[%c1_10, %c0_11] : memref<4x8xf32, #tpu.memory_space<smem>>
    %12 = vector.broadcast %11 : f32 to vector<1x128xf32>
    %13 = arith.mulf %3, %12 : vector<1x128xf32>
    %14 = arith.addf %10, %13 : vector<1x128xf32>
    %c2_12 = arith.constant 2 : index
    %c0_13 = arith.constant 0 : index
    %15 = memref.load %arg1[%c2_12, %c0_13] : memref<4x8xf32, #tpu.memory_space<smem>>
    %16 = vector.broadcast %15 : f32 to vector<1x128xf32>
    %17 = arith.mulf %5, %16 : vector<1x128xf32>
    %18 = arith.addf %14, %17 : vector<1x128xf32>
    %c3_14 = arith.constant 3 : index
    %c0_15 = arith.constant 0 : index
    %19 = memref.load %arg1[%c3_14, %c0_15] : memref<4x8xf32, #tpu.memory_space<smem>>
    %20 = vector.broadcast %19 : f32 to vector<1x128xf32>
    %21 = arith.mulf %7, %20 : vector<1x128xf32>
    %22 = arith.addf %18, %21 : vector<1x128xf32>
    %c0_16 = arith.constant 0 : index
    %23 = memref.load %arg2[%c0_16] : memref<8xf32, #tpu.memory_space<smem>>
    %24 = vector.broadcast %23 : f32 to vector<1x128xf32>
    %25 = arith.addf %22, %24 : vector<1x128xf32>
    %cst = arith.constant 0.000000e+00 : f32
    %26 = vector.broadcast %cst : f32 to vector<1x128xf32>
    %27 = arith.maximumf %25, %26 : vector<1x128xf32>
    %c0_17 = arith.constant 0 : index
    %c1_18 = arith.constant 1 : index
    %28 = memref.load %arg1[%c0_17, %c1_18] : memref<4x8xf32, #tpu.memory_space<smem>>
    %29 = vector.broadcast %28 : f32 to vector<1x128xf32>
    %30 = arith.mulf %1, %29 : vector<1x128xf32>
    %c1_19 = arith.constant 1 : index
    %c1_20 = arith.constant 1 : index
    %31 = memref.load %arg1[%c1_19, %c1_20] : memref<4x8xf32, #tpu.memory_space<smem>>
    %32 = vector.broadcast %31 : f32 to vector<1x128xf32>
    %33 = arith.mulf %3, %32 : vector<1x128xf32>
    %34 = arith.addf %30, %33 : vector<1x128xf32>
    %c2_21 = arith.constant 2 : index
    %c1_22 = arith.constant 1 : index
    %35 = memref.load %arg1[%c2_21, %c1_22] : memref<4x8xf32, #tpu.memory_space<smem>>
    %36 = vector.broadcast %35 : f32 to vector<1x128xf32>
    %37 = arith.mulf %5, %36 : vector<1x128xf32>
    %38 = arith.addf %34, %37 : vector<1x128xf32>
    %c3_23 = arith.constant 3 : index
    %c1_24 = arith.constant 1 : index
    %39 = memref.load %arg1[%c3_23, %c1_24] : memref<4x8xf32, #tpu.memory_space<smem>>
    %40 = vector.broadcast %39 : f32 to vector<1x128xf32>
    %41 = arith.mulf %7, %40 : vector<1x128xf32>
    %42 = arith.addf %38, %41 : vector<1x128xf32>
    %c1_25 = arith.constant 1 : index
    %43 = memref.load %arg2[%c1_25] : memref<8xf32, #tpu.memory_space<smem>>
    %44 = vector.broadcast %43 : f32 to vector<1x128xf32>
    %45 = arith.addf %42, %44 : vector<1x128xf32>
    %cst_26 = arith.constant 0.000000e+00 : f32
    %46 = vector.broadcast %cst_26 : f32 to vector<1x128xf32>
    %47 = arith.maximumf %45, %46 : vector<1x128xf32>
    %c0_27 = arith.constant 0 : index
    %c2_28 = arith.constant 2 : index
    %48 = memref.load %arg1[%c0_27, %c2_28] : memref<4x8xf32, #tpu.memory_space<smem>>
    %49 = vector.broadcast %48 : f32 to vector<1x128xf32>
    %50 = arith.mulf %1, %49 : vector<1x128xf32>
    %c1_29 = arith.constant 1 : index
    %c2_30 = arith.constant 2 : index
    %51 = memref.load %arg1[%c1_29, %c2_30] : memref<4x8xf32, #tpu.memory_space<smem>>
    %52 = vector.broadcast %51 : f32 to vector<1x128xf32>
    %53 = arith.mulf %3, %52 : vector<1x128xf32>
    %54 = arith.addf %50, %53 : vector<1x128xf32>
    %c2_31 = arith.constant 2 : index
    %c2_32 = arith.constant 2 : index
    %55 = memref.load %arg1[%c2_31, %c2_32] : memref<4x8xf32, #tpu.memory_space<smem>>
    %56 = vector.broadcast %55 : f32 to vector<1x128xf32>
    %57 = arith.mulf %5, %56 : vector<1x128xf32>
    %58 = arith.addf %54, %57 : vector<1x128xf32>
    %c3_33 = arith.constant 3 : index
    %c2_34 = arith.constant 2 : index
    %59 = memref.load %arg1[%c3_33, %c2_34] : memref<4x8xf32, #tpu.memory_space<smem>>
    %60 = vector.broadcast %59 : f32 to vector<1x128xf32>
    %61 = arith.mulf %7, %60 : vector<1x128xf32>
    %62 = arith.addf %58, %61 : vector<1x128xf32>
    %c2_35 = arith.constant 2 : index
    %63 = memref.load %arg2[%c2_35] : memref<8xf32, #tpu.memory_space<smem>>
    %64 = vector.broadcast %63 : f32 to vector<1x128xf32>
    %65 = arith.addf %62, %64 : vector<1x128xf32>
    %cst_36 = arith.constant 0.000000e+00 : f32
    %66 = vector.broadcast %cst_36 : f32 to vector<1x128xf32>
    %67 = arith.maximumf %65, %66 : vector<1x128xf32>
    %c0_37 = arith.constant 0 : index
    %c3_38 = arith.constant 3 : index
    %68 = memref.load %arg1[%c0_37, %c3_38] : memref<4x8xf32, #tpu.memory_space<smem>>
    %69 = vector.broadcast %68 : f32 to vector<1x128xf32>
    %70 = arith.mulf %1, %69 : vector<1x128xf32>
    %c1_39 = arith.constant 1 : index
    %c3_40 = arith.constant 3 : index
    %71 = memref.load %arg1[%c1_39, %c3_40] : memref<4x8xf32, #tpu.memory_space<smem>>
    %72 = vector.broadcast %71 : f32 to vector<1x128xf32>
    %73 = arith.mulf %3, %72 : vector<1x128xf32>
    %74 = arith.addf %70, %73 : vector<1x128xf32>
    %c2_41 = arith.constant 2 : index
    %c3_42 = arith.constant 3 : index
    %75 = memref.load %arg1[%c2_41, %c3_42] : memref<4x8xf32, #tpu.memory_space<smem>>
    %76 = vector.broadcast %75 : f32 to vector<1x128xf32>
    %77 = arith.mulf %5, %76 : vector<1x128xf32>
    %78 = arith.addf %74, %77 : vector<1x128xf32>
    %c3_43 = arith.constant 3 : index
    %c3_44 = arith.constant 3 : index
    %79 = memref.load %arg1[%c3_43, %c3_44] : memref<4x8xf32, #tpu.memory_space<smem>>
    %80 = vector.broadcast %79 : f32 to vector<1x128xf32>
    %81 = arith.mulf %7, %80 : vector<1x128xf32>
    %82 = arith.addf %78, %81 : vector<1x128xf32>
    %c3_45 = arith.constant 3 : index
    %83 = memref.load %arg2[%c3_45] : memref<8xf32, #tpu.memory_space<smem>>
    %84 = vector.broadcast %83 : f32 to vector<1x128xf32>
    %85 = arith.addf %82, %84 : vector<1x128xf32>
    %cst_46 = arith.constant 0.000000e+00 : f32
    %86 = vector.broadcast %cst_46 : f32 to vector<1x128xf32>
    %87 = arith.maximumf %85, %86 : vector<1x128xf32>
    %c0_47 = arith.constant 0 : index
    %c4 = arith.constant 4 : index
    %88 = memref.load %arg1[%c0_47, %c4] : memref<4x8xf32, #tpu.memory_space<smem>>
    %89 = vector.broadcast %88 : f32 to vector<1x128xf32>
    %90 = arith.mulf %1, %89 : vector<1x128xf32>
    %c1_48 = arith.constant 1 : index
    %c4_49 = arith.constant 4 : index
    %91 = memref.load %arg1[%c1_48, %c4_49] : memref<4x8xf32, #tpu.memory_space<smem>>
    %92 = vector.broadcast %91 : f32 to vector<1x128xf32>
    %93 = arith.mulf %3, %92 : vector<1x128xf32>
    %94 = arith.addf %90, %93 : vector<1x128xf32>
    %c2_50 = arith.constant 2 : index
    %c4_51 = arith.constant 4 : index
    %95 = memref.load %arg1[%c2_50, %c4_51] : memref<4x8xf32, #tpu.memory_space<smem>>
    %96 = vector.broadcast %95 : f32 to vector<1x128xf32>
    %97 = arith.mulf %5, %96 : vector<1x128xf32>
    %98 = arith.addf %94, %97 : vector<1x128xf32>
    %c3_52 = arith.constant 3 : index
    %c4_53 = arith.constant 4 : index
    %99 = memref.load %arg1[%c3_52, %c4_53] : memref<4x8xf32, #tpu.memory_space<smem>>
    %100 = vector.broadcast %99 : f32 to vector<1x128xf32>
    %101 = arith.mulf %7, %100 : vector<1x128xf32>
    %102 = arith.addf %98, %101 : vector<1x128xf32>
    %c4_54 = arith.constant 4 : index
    %103 = memref.load %arg2[%c4_54] : memref<8xf32, #tpu.memory_space<smem>>
    %104 = vector.broadcast %103 : f32 to vector<1x128xf32>
    %105 = arith.addf %102, %104 : vector<1x128xf32>
    %cst_55 = arith.constant 0.000000e+00 : f32
    %106 = vector.broadcast %cst_55 : f32 to vector<1x128xf32>
    %107 = arith.maximumf %105, %106 : vector<1x128xf32>
    %c0_56 = arith.constant 0 : index
    %c5 = arith.constant 5 : index
    %108 = memref.load %arg1[%c0_56, %c5] : memref<4x8xf32, #tpu.memory_space<smem>>
    %109 = vector.broadcast %108 : f32 to vector<1x128xf32>
    %110 = arith.mulf %1, %109 : vector<1x128xf32>
    %c1_57 = arith.constant 1 : index
    %c5_58 = arith.constant 5 : index
    %111 = memref.load %arg1[%c1_57, %c5_58] : memref<4x8xf32, #tpu.memory_space<smem>>
    %112 = vector.broadcast %111 : f32 to vector<1x128xf32>
    %113 = arith.mulf %3, %112 : vector<1x128xf32>
    %114 = arith.addf %110, %113 : vector<1x128xf32>
    %c2_59 = arith.constant 2 : index
    %c5_60 = arith.constant 5 : index
    %115 = memref.load %arg1[%c2_59, %c5_60] : memref<4x8xf32, #tpu.memory_space<smem>>
    %116 = vector.broadcast %115 : f32 to vector<1x128xf32>
    %117 = arith.mulf %5, %116 : vector<1x128xf32>
    %118 = arith.addf %114, %117 : vector<1x128xf32>
    %c3_61 = arith.constant 3 : index
    %c5_62 = arith.constant 5 : index
    %119 = memref.load %arg1[%c3_61, %c5_62] : memref<4x8xf32, #tpu.memory_space<smem>>
    %120 = vector.broadcast %119 : f32 to vector<1x128xf32>
    %121 = arith.mulf %7, %120 : vector<1x128xf32>
    %122 = arith.addf %118, %121 : vector<1x128xf32>
    %c5_63 = arith.constant 5 : index
    %123 = memref.load %arg2[%c5_63] : memref<8xf32, #tpu.memory_space<smem>>
    %124 = vector.broadcast %123 : f32 to vector<1x128xf32>
    %125 = arith.addf %122, %124 : vector<1x128xf32>
    %cst_64 = arith.constant 0.000000e+00 : f32
    %126 = vector.broadcast %cst_64 : f32 to vector<1x128xf32>
    %127 = arith.maximumf %125, %126 : vector<1x128xf32>
    %c0_65 = arith.constant 0 : index
    %c6 = arith.constant 6 : index
    %128 = memref.load %arg1[%c0_65, %c6] : memref<4x8xf32, #tpu.memory_space<smem>>
    %129 = vector.broadcast %128 : f32 to vector<1x128xf32>
    %130 = arith.mulf %1, %129 : vector<1x128xf32>
    %c1_66 = arith.constant 1 : index
    %c6_67 = arith.constant 6 : index
    %131 = memref.load %arg1[%c1_66, %c6_67] : memref<4x8xf32, #tpu.memory_space<smem>>
    %132 = vector.broadcast %131 : f32 to vector<1x128xf32>
    %133 = arith.mulf %3, %132 : vector<1x128xf32>
    %134 = arith.addf %130, %133 : vector<1x128xf32>
    %c2_68 = arith.constant 2 : index
    %c6_69 = arith.constant 6 : index
    %135 = memref.load %arg1[%c2_68, %c6_69] : memref<4x8xf32, #tpu.memory_space<smem>>
    %136 = vector.broadcast %135 : f32 to vector<1x128xf32>
    %137 = arith.mulf %5, %136 : vector<1x128xf32>
    %138 = arith.addf %134, %137 : vector<1x128xf32>
    %c3_70 = arith.constant 3 : index
    %c6_71 = arith.constant 6 : index
    %139 = memref.load %arg1[%c3_70, %c6_71] : memref<4x8xf32, #tpu.memory_space<smem>>
    %140 = vector.broadcast %139 : f32 to vector<1x128xf32>
    %141 = arith.mulf %7, %140 : vector<1x128xf32>
    %142 = arith.addf %138, %141 : vector<1x128xf32>
    %c6_72 = arith.constant 6 : index
    %143 = memref.load %arg2[%c6_72] : memref<8xf32, #tpu.memory_space<smem>>
    %144 = vector.broadcast %143 : f32 to vector<1x128xf32>
    %145 = arith.addf %142, %144 : vector<1x128xf32>
    %cst_73 = arith.constant 0.000000e+00 : f32
    %146 = vector.broadcast %cst_73 : f32 to vector<1x128xf32>
    %147 = arith.maximumf %145, %146 : vector<1x128xf32>
    %c0_74 = arith.constant 0 : index
    %c7 = arith.constant 7 : index
    %148 = memref.load %arg1[%c0_74, %c7] : memref<4x8xf32, #tpu.memory_space<smem>>
    %149 = vector.broadcast %148 : f32 to vector<1x128xf32>
    %150 = arith.mulf %1, %149 : vector<1x128xf32>
    %c1_75 = arith.constant 1 : index
    %c7_76 = arith.constant 7 : index
    %151 = memref.load %arg1[%c1_75, %c7_76] : memref<4x8xf32, #tpu.memory_space<smem>>
    %152 = vector.broadcast %151 : f32 to vector<1x128xf32>
    %153 = arith.mulf %3, %152 : vector<1x128xf32>
    %154 = arith.addf %150, %153 : vector<1x128xf32>
    %c2_77 = arith.constant 2 : index
    %c7_78 = arith.constant 7 : index
    %155 = memref.load %arg1[%c2_77, %c7_78] : memref<4x8xf32, #tpu.memory_space<smem>>
    %156 = vector.broadcast %155 : f32 to vector<1x128xf32>
    %157 = arith.mulf %5, %156 : vector<1x128xf32>
    %158 = arith.addf %154, %157 : vector<1x128xf32>
    %c3_79 = arith.constant 3 : index
    %c7_80 = arith.constant 7 : index
    %159 = memref.load %arg1[%c3_79, %c7_80] : memref<4x8xf32, #tpu.memory_space<smem>>
    %160 = vector.broadcast %159 : f32 to vector<1x128xf32>
    %161 = arith.mulf %7, %160 : vector<1x128xf32>
    %162 = arith.addf %158, %161 : vector<1x128xf32>
    %c7_81 = arith.constant 7 : index
    %163 = memref.load %arg2[%c7_81] : memref<8xf32, #tpu.memory_space<smem>>
    %164 = vector.broadcast %163 : f32 to vector<1x128xf32>
    %165 = arith.addf %162, %164 : vector<1x128xf32>
    %cst_82 = arith.constant 0.000000e+00 : f32
    %166 = vector.broadcast %cst_82 : f32 to vector<1x128xf32>
    %167 = arith.maximumf %165, %166 : vector<1x128xf32>
    %c0_83 = arith.constant 0 : index
    %c0_84 = arith.constant 0 : index
    %168 = memref.load %arg3[%c0_83, %c0_84] : memref<8x3xf32, #tpu.memory_space<smem>>
    %169 = vector.broadcast %168 : f32 to vector<1x128xf32>
    %170 = arith.mulf %27, %169 : vector<1x128xf32>
    %c1_85 = arith.constant 1 : index
    %c0_86 = arith.constant 0 : index
    %171 = memref.load %arg3[%c1_85, %c0_86] : memref<8x3xf32, #tpu.memory_space<smem>>
    %172 = vector.broadcast %171 : f32 to vector<1x128xf32>
    %173 = arith.mulf %47, %172 : vector<1x128xf32>
    %174 = arith.addf %170, %173 : vector<1x128xf32>
    %c2_87 = arith.constant 2 : index
    %c0_88 = arith.constant 0 : index
    %175 = memref.load %arg3[%c2_87, %c0_88] : memref<8x3xf32, #tpu.memory_space<smem>>
    %176 = vector.broadcast %175 : f32 to vector<1x128xf32>
    %177 = arith.mulf %67, %176 : vector<1x128xf32>
    %178 = arith.addf %174, %177 : vector<1x128xf32>
    %c3_89 = arith.constant 3 : index
    %c0_90 = arith.constant 0 : index
    %179 = memref.load %arg3[%c3_89, %c0_90] : memref<8x3xf32, #tpu.memory_space<smem>>
    %180 = vector.broadcast %179 : f32 to vector<1x128xf32>
    %181 = arith.mulf %87, %180 : vector<1x128xf32>
    %182 = arith.addf %178, %181 : vector<1x128xf32>
    %c4_91 = arith.constant 4 : index
    %c0_92 = arith.constant 0 : index
    %183 = memref.load %arg3[%c4_91, %c0_92] : memref<8x3xf32, #tpu.memory_space<smem>>
    %184 = vector.broadcast %183 : f32 to vector<1x128xf32>
    %185 = arith.mulf %107, %184 : vector<1x128xf32>
    %186 = arith.addf %182, %185 : vector<1x128xf32>
    %c5_93 = arith.constant 5 : index
    %c0_94 = arith.constant 0 : index
    %187 = memref.load %arg3[%c5_93, %c0_94] : memref<8x3xf32, #tpu.memory_space<smem>>
    %188 = vector.broadcast %187 : f32 to vector<1x128xf32>
    %189 = arith.mulf %127, %188 : vector<1x128xf32>
    %190 = arith.addf %186, %189 : vector<1x128xf32>
    %c6_95 = arith.constant 6 : index
    %c0_96 = arith.constant 0 : index
    %191 = memref.load %arg3[%c6_95, %c0_96] : memref<8x3xf32, #tpu.memory_space<smem>>
    %192 = vector.broadcast %191 : f32 to vector<1x128xf32>
    %193 = arith.mulf %147, %192 : vector<1x128xf32>
    %194 = arith.addf %190, %193 : vector<1x128xf32>
    %c7_97 = arith.constant 7 : index
    %c0_98 = arith.constant 0 : index
    %195 = memref.load %arg3[%c7_97, %c0_98] : memref<8x3xf32, #tpu.memory_space<smem>>
    %196 = vector.broadcast %195 : f32 to vector<1x128xf32>
    %197 = arith.mulf %167, %196 : vector<1x128xf32>
    %198 = arith.addf %194, %197 : vector<1x128xf32>
    %c0_99 = arith.constant 0 : index
    %199 = memref.load %arg4[%c0_99] : memref<3xf32, #tpu.memory_space<smem>>
    %200 = vector.broadcast %199 : f32 to vector<1x128xf32>
    %201 = arith.addf %198, %200 : vector<1x128xf32>
    %c0_100 = arith.constant 0 : index
    %c1_101 = arith.constant 1 : index
    %202 = memref.load %arg3[%c0_100, %c1_101] : memref<8x3xf32, #tpu.memory_space<smem>>
    %203 = vector.broadcast %202 : f32 to vector<1x128xf32>
    %204 = arith.mulf %27, %203 : vector<1x128xf32>
    %c1_102 = arith.constant 1 : index
    %c1_103 = arith.constant 1 : index
    %205 = memref.load %arg3[%c1_102, %c1_103] : memref<8x3xf32, #tpu.memory_space<smem>>
    %206 = vector.broadcast %205 : f32 to vector<1x128xf32>
    %207 = arith.mulf %47, %206 : vector<1x128xf32>
    %208 = arith.addf %204, %207 : vector<1x128xf32>
    %c2_104 = arith.constant 2 : index
    %c1_105 = arith.constant 1 : index
    %209 = memref.load %arg3[%c2_104, %c1_105] : memref<8x3xf32, #tpu.memory_space<smem>>
    %210 = vector.broadcast %209 : f32 to vector<1x128xf32>
    %211 = arith.mulf %67, %210 : vector<1x128xf32>
    %212 = arith.addf %208, %211 : vector<1x128xf32>
    %c3_106 = arith.constant 3 : index
    %c1_107 = arith.constant 1 : index
    %213 = memref.load %arg3[%c3_106, %c1_107] : memref<8x3xf32, #tpu.memory_space<smem>>
    %214 = vector.broadcast %213 : f32 to vector<1x128xf32>
    %215 = arith.mulf %87, %214 : vector<1x128xf32>
    %216 = arith.addf %212, %215 : vector<1x128xf32>
    %c4_108 = arith.constant 4 : index
    %c1_109 = arith.constant 1 : index
    %217 = memref.load %arg3[%c4_108, %c1_109] : memref<8x3xf32, #tpu.memory_space<smem>>
    %218 = vector.broadcast %217 : f32 to vector<1x128xf32>
    %219 = arith.mulf %107, %218 : vector<1x128xf32>
    %220 = arith.addf %216, %219 : vector<1x128xf32>
    %c5_110 = arith.constant 5 : index
    %c1_111 = arith.constant 1 : index
    %221 = memref.load %arg3[%c5_110, %c1_111] : memref<8x3xf32, #tpu.memory_space<smem>>
    %222 = vector.broadcast %221 : f32 to vector<1x128xf32>
    %223 = arith.mulf %127, %222 : vector<1x128xf32>
    %224 = arith.addf %220, %223 : vector<1x128xf32>
    %c6_112 = arith.constant 6 : index
    %c1_113 = arith.constant 1 : index
    %225 = memref.load %arg3[%c6_112, %c1_113] : memref<8x3xf32, #tpu.memory_space<smem>>
    %226 = vector.broadcast %225 : f32 to vector<1x128xf32>
    %227 = arith.mulf %147, %226 : vector<1x128xf32>
    %228 = arith.addf %224, %227 : vector<1x128xf32>
    %c7_114 = arith.constant 7 : index
    %c1_115 = arith.constant 1 : index
    %229 = memref.load %arg3[%c7_114, %c1_115] : memref<8x3xf32, #tpu.memory_space<smem>>
    %230 = vector.broadcast %229 : f32 to vector<1x128xf32>
    %231 = arith.mulf %167, %230 : vector<1x128xf32>
    %232 = arith.addf %228, %231 : vector<1x128xf32>
    %c1_116 = arith.constant 1 : index
    %233 = memref.load %arg4[%c1_116] : memref<3xf32, #tpu.memory_space<smem>>
    %234 = vector.broadcast %233 : f32 to vector<1x128xf32>
    %235 = arith.addf %232, %234 : vector<1x128xf32>
    %c0_117 = arith.constant 0 : index
    %c2_118 = arith.constant 2 : index
    %236 = memref.load %arg3[%c0_117, %c2_118] : memref<8x3xf32, #tpu.memory_space<smem>>
    %237 = vector.broadcast %236 : f32 to vector<1x128xf32>
    %238 = arith.mulf %27, %237 : vector<1x128xf32>
    %c1_119 = arith.constant 1 : index
    %c2_120 = arith.constant 2 : index
    %239 = memref.load %arg3[%c1_119, %c2_120] : memref<8x3xf32, #tpu.memory_space<smem>>
    %240 = vector.broadcast %239 : f32 to vector<1x128xf32>
    %241 = arith.mulf %47, %240 : vector<1x128xf32>
    %242 = arith.addf %238, %241 : vector<1x128xf32>
    %c2_121 = arith.constant 2 : index
    %c2_122 = arith.constant 2 : index
    %243 = memref.load %arg3[%c2_121, %c2_122] : memref<8x3xf32, #tpu.memory_space<smem>>
    %244 = vector.broadcast %243 : f32 to vector<1x128xf32>
    %245 = arith.mulf %67, %244 : vector<1x128xf32>
    %246 = arith.addf %242, %245 : vector<1x128xf32>
    %c3_123 = arith.constant 3 : index
    %c2_124 = arith.constant 2 : index
    %247 = memref.load %arg3[%c3_123, %c2_124] : memref<8x3xf32, #tpu.memory_space<smem>>
    %248 = vector.broadcast %247 : f32 to vector<1x128xf32>
    %249 = arith.mulf %87, %248 : vector<1x128xf32>
    %250 = arith.addf %246, %249 : vector<1x128xf32>
    %c4_125 = arith.constant 4 : index
    %c2_126 = arith.constant 2 : index
    %251 = memref.load %arg3[%c4_125, %c2_126] : memref<8x3xf32, #tpu.memory_space<smem>>
    %252 = vector.broadcast %251 : f32 to vector<1x128xf32>
    %253 = arith.mulf %107, %252 : vector<1x128xf32>
    %254 = arith.addf %250, %253 : vector<1x128xf32>
    %c5_127 = arith.constant 5 : index
    %c2_128 = arith.constant 2 : index
    %255 = memref.load %arg3[%c5_127, %c2_128] : memref<8x3xf32, #tpu.memory_space<smem>>
    %256 = vector.broadcast %255 : f32 to vector<1x128xf32>
    %257 = arith.mulf %127, %256 : vector<1x128xf32>
    %258 = arith.addf %254, %257 : vector<1x128xf32>
    %c6_129 = arith.constant 6 : index
    %c2_130 = arith.constant 2 : index
    %259 = memref.load %arg3[%c6_129, %c2_130] : memref<8x3xf32, #tpu.memory_space<smem>>
    %260 = vector.broadcast %259 : f32 to vector<1x128xf32>
    %261 = arith.mulf %147, %260 : vector<1x128xf32>
    %262 = arith.addf %258, %261 : vector<1x128xf32>
    %c7_131 = arith.constant 7 : index
    %c2_132 = arith.constant 2 : index
    %263 = memref.load %arg3[%c7_131, %c2_132] : memref<8x3xf32, #tpu.memory_space<smem>>
    %264 = vector.broadcast %263 : f32 to vector<1x128xf32>
    %265 = arith.mulf %167, %264 : vector<1x128xf32>
    %266 = arith.addf %262, %265 : vector<1x128xf32>
    %c2_133 = arith.constant 2 : index
    %267 = memref.load %arg4[%c2_133] : memref<3xf32, #tpu.memory_space<smem>>
    %268 = vector.broadcast %267 : f32 to vector<1x128xf32>
    %269 = arith.addf %266, %268 : vector<1x128xf32>
    %270 = arith.maximumf %201, %235 : vector<1x128xf32>
    %271 = arith.maximumf %270, %269 : vector<1x128xf32>
    %272 = arith.subf %201, %271 : vector<1x128xf32>
    %273 = arith.subf %235, %271 : vector<1x128xf32>
    %274 = arith.subf %269, %271 : vector<1x128xf32>
    %275 = math.exp %272 : vector<1x128xf32>
    %276 = math.exp %273 : vector<1x128xf32>
    %277 = arith.addf %275, %276 : vector<1x128xf32>
    %278 = math.exp %274 : vector<1x128xf32>
    %279 = arith.addf %277, %278 : vector<1x128xf32>
    %280 = math.log %279 : vector<1x128xf32>
    %281 = arith.subf %272, %280 : vector<1x128xf32>
    %c0_134 = arith.constant 0 : index
    %c0_135 = arith.constant 0 : index
    %c0_136 = arith.constant 0 : index
    %282 = vector.load %arg6[%c0_134, %c0_135, %c0_136] : memref<3x1x128xf32, #tpu.memory_space<vmem>>, vector<1x1x128xf32>
    %283 = vector.shape_cast %282 : vector<1x1x128xf32> to vector<1x128xf32>
    %284 = vector.shape_cast %281 : vector<1x128xf32> to vector<1x1x128xf32>
    tpu.vector_store %arg6[%c0_134, %c0_135, %c0_136], %284 {strides = array<i32>} : memref<3x1x128xf32, #tpu.memory_space<vmem>>, vector<1x1x128xf32>,
    %285 = arith.subf %273, %280 : vector<1x128xf32>
    %c1_137 = arith.constant 1 : index
    %c0_138 = arith.constant 0 : index
    %c0_139 = arith.constant 0 : index
    %286 = vector.load %arg6[%c1_137, %c0_138, %c0_139] : memref<3x1x128xf32, #tpu.memory_space<vmem>>, vector<1x1x128xf32>
    %287 = vector.shape_cast %286 : vector<1x1x128xf32> to vector<1x128xf32>
    %288 = vector.shape_cast %285 : vector<1x128xf32> to vector<1x1x128xf32>
    tpu.vector_store %arg6[%c1_137, %c0_138, %c0_139], %288 {strides = array<i32>} : memref<3x1x128xf32, #tpu.memory_space<vmem>>, vector<1x1x128xf32>,
    %289 = arith.subf %274, %280 : vector<1x128xf32>
    %c2_140 = arith.constant 2 : index
    %c0_141 = arith.constant 0 : index
    %c0_142 = arith.constant 0 : index
    %290 = vector.load %arg6[%c2_140, %c0_141, %c0_142] : memref<3x1x128xf32, #tpu.memory_space<vmem>>, vector<1x1x128xf32>
    %291 = vector.shape_cast %290 : vector<1x1x128xf32> to vector<1x128xf32>
    %292 = vector.shape_cast %289 : vector<1x128xf32> to vector<1x1x128xf32>
    tpu.vector_store %arg6[%c2_140, %c0_141, %c0_142], %292 {strides = array<i32>} : memref<3x1x128xf32, #tpu.memory_space<vmem>>, vector<1x1x128xf32>,
    return
  }
  func.func @transform_0(%arg0: i32) -> (i32, i32) {
    %c0_i32 = arith.constant 0 : i32
    %c0_i32_0 = arith.constant 0 : i32
    %c0_i32_1 = arith.constant 0 : i32
    return %c0_i32, %c0_i32_0 : i32, i32
  }
  func.func @transform_1(%arg0: i32) -> i32 {
    %c0_i32 = arith.constant 0 : i32
    %c0_i32_0 = arith.constant 0 : i32
    return %c0_i32 : i32
  }
  func.func @transform_2(%arg0: i32) -> (i32, i32) {
    %c0_i32 = arith.constant 0 : i32
    %c0_i32_0 = arith.constant 0 : i32
    %c0_i32_1 = arith.constant 0 : i32
    return %c0_i32, %c0_i32_0 : i32, i32
  }
  func.func @transform_3(%arg0: i32) -> i32 {
    %c0_i32 = arith.constant 0 : i32
    %c0_i32_0 = arith.constant 0 : i32
    return %c0_i32 : i32
  }
  func.func @transform_4(%arg0: i32) -> (i32, i32, i32) {
    %c0_i32 = arith.constant 0 : i32
    %c0_i32_0 = arith.constant 0 : i32
    %c0_i32_1 = arith.constant 0 : i32
    return %c0_i32, %arg0, %c0_i32_0 : i32, i32, i32
  }
  func.func @transform_5(%arg0: i32) -> (i32, i32, i32) {
    %c0_i32 = arith.constant 0 : i32
    %c0_i32_0 = arith.constant 0 : i32
    %c0_i32_1 = arith.constant 0 : i32
    return %c0_i32, %arg0, %c0_i32_0 : i32, i32, i32
  }
}

</mosaic_0001>

<llo_original>
// kernel: tpu_custom_call.1
$region0: #{tpu_custom_call.1}
  #allocation0 [shape = 'u32[]', space=smem, size = 0x4, offset = 0x4, fixed_abs, tag = 'smem constant byte address 0x4 - core index']
  #allocation1 [shape = 'u32[144,128]{1,0:T(1,128)}', space=vmem, size = 0x12000, scoped, tag = 'internal scratch']
  %s0 = inlined_call_operand.vmem [shape: f32[4,8], index: 0, kind: input, shape index: {}]
  %s1 = inlined_call_operand.vmem [shape: f32[8], index: 1, kind: input, shape index: {}]
  %s2 = inlined_call_operand.vmem [shape: f32[8,3], index: 2, kind: input, shape index: {}]
  %s3 = inlined_call_operand.vmem [shape: f32[3], index: 3, kind: input, shape index: {}]
  %s4 = inlined_call_operand.vmem [shape: f32[4,1,128], index: 4, kind: input, shape index: {}]
  %s5 = inlined_call_operand.hbm [shape: f32[3,1,128], index: 5, kind: output, shape index: {}]
  %s6 = sld [smem:[#allocation0]]
  $region46: #{tpu_custom_call.1} parent=0
    _
  %s8 = ssub.s32 1, %s6
  %s9 = scalar_select 0, %s8, %s6
  $region1: #{tpu_custom_call.1} parent=0
    #allocation2 [shape = 'u8[2048]{0}', space=smem, size = 0x800, scoped, tag = 'input window, operand 0, single buffered']
    #allocation3 [shape = 's32[1]{0}', space=sflag, size = 0x4, scoped, tag = 'scoped memory for tpu_custom_call.1']
    #allocation4 [shape = 's32[1]{0}', space=sflag, size = 0x4, scoped, tag = 'scoped memory for tpu_custom_call.1']
    #allocation5 [shape = 'u8[512]{0}', space=smem, size = 0x200, scoped, tag = 'input window, operand 1, single buffered']
    #allocation6 [shape = 's32[1]{0}', space=sflag, size = 0x4, scoped, tag = 'scoped memory for tpu_custom_call.1']
    #allocation7 [shape = 'u8[4096]{0}', space=smem, size = 0x1000, scoped, tag = 'input window, operand 2, single buffered']
    #allocation8 [shape = 'u8[512]{0}', space=smem, size = 0x200, scoped, tag = 'input window, operand 3, single buffered']
    #allocation9 [shape = 's32[1]{0}', space=sflag, size = 0x4, scoped, tag = 'scoped memory for tpu_custom_call.1']
    #allocation10 [shape = 'u8[1536]{0}', space=vmem, size = 0x800, scoped, tag = 'output window, operand 0, single buffered']
    %10 = vsyncpa [#allocation4], 0
    %11 = vsyncpa [#allocation6], 0
    %12 = vsyncpa [#allocation9], 0
    %13 = vsyncpa [#allocation3], 0
    // Predicated region
    $region2: #{tpu_custom_call.1} parent=1 // pred_check
      _
    $region3: #{tpu_custom_call.1} parent=1 // pred_check_branch
      %15 = sbr.rel (0) target = $region5
    $region4: #{tpu_custom_call.1} parent=1 // pred_region
      %s17 = ssub.s32 64, 64
      %18 = vsyncadd [#allocation4], %s17
      %s20 = sshll.u32 %s0, 4
      %s21 = int_to_ptr.vmem [resolvable:$true] %s20
      %23 = dma.vmem_to_smem %s21, 64, [#allocation2], [#allocation4]
    $region5: #{tpu_custom_call.1} parent=1 // pred_fallthru
      _
    // Predicated region
    $region6: #{tpu_custom_call.1} parent=1 // pred_check
      _
    $region7: #{tpu_custom_call.1} parent=1 // pred_check_branch
      %25 = sbr.rel (0) target = $region9
    $region8: #{tpu_custom_call.1} parent=1 // pred_region
      %s27 = ssub.s32 16, 16
      %28 = vsyncadd [#allocation6], %s27
      %s30 = sshll.u32 %s1, 4
      %s31 = int_to_ptr.vmem [resolvable:$true] %s30
      %33 = dma.vmem_to_smem %s31, 16, [#allocation5], [#allocation6]
    $region9: #{tpu_custom_call.1} parent=1 // pred_fallthru
      _
    // Predicated region
    $region10: #{tpu_custom_call.1} parent=1 // pred_check
      _
    $region11: #{tpu_custom_call.1} parent=1 // pred_check_branch
      %35 = sbr.rel (0) target = $region13
    $region12: #{tpu_custom_call.1} parent=1 // pred_region
      %s37 = ssub.s32 128, 128
      %38 = vsyncadd [#allocation6], %s37
      %s40 = sshll.u32 %s2, 4
      %s41 = int_to_ptr.vmem [resolvable:$true] %s40
      %43 = dma.vmem_to_smem %s41, 128, [#allocation7], [#allocation6]
    $region13: #{tpu_custom_call.1} parent=1 // pred_fallthru
      _
    // Predicated region
    $region14: #{tpu_custom_call.1} parent=1 // pred_check
      _
    $region15: #{tpu_custom_call.1} parent=1 // pred_check_branch
      %45 = sbr.rel (0) target = $region17
    $region16: #{tpu_custom_call.1} parent=1 // pred_region
      %s47 = ssub.s32 16, 16
      %48 = vsyncadd [#allocation9], %s47
      %s50 = sshll.u32 %s3, 4
      %s51 = int_to_ptr.vmem [resolvable:$true] %s50
      %53 = dma.vmem_to_smem %s51, 16, [#allocation8], [#allocation9]
    $region17: #{tpu_custom_call.1} parent=1 // pred_fallthru
      _
    // Predicated region
    $region18: #{tpu_custom_call.1} parent=1 // pred_check
      _
    $region19: #{tpu_custom_call.1} parent=1 // pred_check_branch
      %55 = sbr.rel (0) target = $region21
    $region20: #{tpu_custom_call.1} parent=1 // pred_region
      _
    $region21: #{tpu_custom_call.1} parent=1 // pred_fallthru
      _
    // Predicated region
    $region22: #{tpu_custom_call.1} parent=1 // pred_check
      _
    $region23: #{tpu_custom_call.1} parent=1 // pred_check_branch
      %57 = sbr.rel (0) target = $region25
    $region24: #{tpu_custom_call.1} parent=1 // pred_region
      %58 = dma.done [#allocation4], 64
    $region25: #{tpu_custom_call.1} parent=1 // pred_fallthru
      _
    // Predicated region
    $region26: #{tpu_custom_call.1} parent=1 // pred_check
      _
    $region27: #{tpu_custom_call.1} parent=1 // pred_check_branch
      %60 = sbr.rel (0) target = $region29
    $region28: #{tpu_custom_call.1} parent=1 // pred_region
      %61 = dma.done [#allocation6], 16
    $region29: #{tpu_custom_call.1} parent=1 // pred_fallthru
      _
    // Predicated region
    $region30: #{tpu_custom_call.1} parent=1 // pred_check
      _
    $region31: #{tpu_custom_call.1} parent=1 // pred_check_branch
      %63 = sbr.rel (0) target = $region33
    $region32: #{tpu_custom_call.1} parent=1 // pred_region
      %64 = dma.done [#allocation6], 128
    $region33: #{tpu_custom_call.1} parent=1 // pred_fallthru
      _
    // Predicated region
    $region34: #{tpu_custom_call.1} parent=1 // pred_check
      _
    $region35: #{tpu_custom_call.1} parent=1 // pred_check_branch
      %66 = sbr.rel (0) target = $region37
    $region36: #{tpu_custom_call.1} parent=1 // pred_region
      %67 = dma.done [#allocation9], 16
    $region37: #{tpu_custom_call.1} parent=1 // pred_fallthru
      _
    %68 = sfence
    %v69 = vld [vmem:[%s4] sm:$0x1]
    %s70 = scalar_lea.vmem %s4, 1
    %v71 = vld [vmem:[%s70] sm:$0x1]
    %s72 = scalar_lea.vmem %s4, 2
    %v73 = vld [vmem:[%s72] sm:$0x1]
    %s74 = scalar_lea.vmem %s4, 3
    %v75 = vld [vmem:[%s74] sm:$0x1]
    %s76 = sld [smem:[#allocation2]]
    %v77 = vstv %s76
    %v78 = vmul.f32 %v69, %v77
    %s79 = sld [smem:[#allocation2 + $0x80]]
    %v80 = vstv %s79
    %v81 = vmul.f32 %v71, %v80
    %v82 = vadd.f32 %v78, %v81
    %s83 = sld [smem:[#allocation2 + $0x100]]
    %v84 = vstv %s83
    %v85 = vmul.f32 %v73, %v84
    %v86 = vadd.f32 %v82, %v85
    %s87 = sld [smem:[#allocation2 + $0x180]]
    %v88 = vstv %s87
    %v89 = vmul.f32 %v75, %v88
    %v90 = vadd.f32 %v86, %v89
    %s91 = sld [smem:[#allocation5]]
    %v92 = vstv %s91
    %v93 = vadd.f32 %v90, %v92
    %v94 = vmax.f32 %v93, 0.0
    %s95 = sld [smem:[#allocation2 + $0x1]]
    %v96 = vstv %s95
    %v97 = vmul.f32 %v69, %v96
    %s98 = sld [smem:[#allocation2 + $0x81]]
    %v99 = vstv %s98
    %v100 = vmul.f32 %v71, %v99
    %v101 = vadd.f32 %v97, %v100
    %s102 = sld [smem:[#allocation2 + $0x101]]
    %v103 = vstv %s102
    %v104 = vmul.f32 %v73, %v103
    %v105 = vadd.f32 %v101, %v104
    %s106 = sld [smem:[#allocation2 + $0x181]]
    %v107 = vstv %s106
    %v108 = vmul.f32 %v75, %v107
    %v109 = vadd.f32 %v105, %v108
    %s110 = sld [smem:[#allocation5 + $0x1]]
    %v111 = vstv %s110
    %v112 = vadd.f32 %v109, %v111
    %v113 = vmax.f32 %v112, 0.0
    %s114 = sld [smem:[#allocation2 + $0x2]]
    %v115 = vstv %s114
    %v116 = vmul.f32 %v69, %v115
    %s117 = sld [smem:[#allocation2 + $0x82]]
    %v118 = vstv %s117
    %v119 = vmul.f32 %v71, %v118
    %v120 = vadd.f32 %v116, %v119
    %s121 = sld [smem:[#allocation2 + $0x102]]
    %v122 = vstv %s121
    %v123 = vmul.f32 %v73, %v122
    %v124 = vadd.f32 %v120, %v123
    %s125 = sld [smem:[#allocation2 + $0x182]]
    %v126 = vstv %s125
    %v127 = vmul.f32 %v75, %v126
    %v128 = vadd.f32 %v124, %v127
    %s129 = sld [smem:[#allocation5 + $0x2]]
    %v130 = vstv %s129
    %v131 = vadd.f32 %v128, %v130
    %v132 = vmax.f32 %v131, 0.0
    %s133 = sld [smem:[#allocation2 + $0x3]]
    %v134 = vstv %s133
    %v135 = vmul.f32 %v69, %v134
    %s136 = sld [smem:[#allocation2 + $0x83]]
    %v137 = vstv %s136
    %v138 = vmul.f32 %v71, %v137
    %v139 = vadd.f32 %v135, %v138
    %s140 = sld [smem:[#allocation2 + $0x103]]
    %v141 = vstv %s140
    %v142 = vmul.f32 %v73, %v141
    %v143 = vadd.f32 %v139, %v142
    %s144 = sld [smem:[#allocation2 + $0x183]]
    %v145 = vstv %s144
    %v146 = vmul.f32 %v75, %v145
    %v147 = vadd.f32 %v143, %v146
    %s148 = sld [smem:[#allocation5 + $0x3]]
    %v149 = vstv %s148
    %v150 = vadd.f32 %v147, %v149
    %v151 = vmax.f32 %v150, 0.0
    %s152 = sld [smem:[#allocation2 + $0x4]]
    %v153 = vstv %s152
    %v154 = vmul.f32 %v69, %v153
    %s155 = sld [smem:[#allocation2 + $0x84]]
    %v156 = vstv %s155
    %v157 = vmul.f32 %v71, %v156
    %v158 = vadd.f32 %v154, %v157
    %s159 = sld [smem:[#allocation2 + $0x104]]
    %v160 = vstv %s159
    %v161 = vmul.f32 %v73, %v160
    %v162 = vadd.f32 %v158, %v161
    %s163 = sld [smem:[#allocation2 + $0x184]]
    %v164 = vstv %s163
    %v165 = vmul.f32 %v75, %v164
    %v166 = vadd.f32 %v162, %v165
    %s167 = sld [smem:[#allocation5 + $0x4]]
    %v168 = vstv %s167
    %v169 = vadd.f32 %v166, %v168
    %v170 = vmax.f32 %v169, 0.0
    %s171 = sld [smem:[#allocation2 + $0x5]]
    %v172 = vstv %s171
    %v173 = vmul.f32 %v69, %v172
    %s174 = sld [smem:[#allocation2 + $0x85]]
    %v175 = vstv %s174
    %v176 = vmul.f32 %v71, %v175
    %v177 = vadd.f32 %v173, %v176
    %s178 = sld [smem:[#allocation2 + $0x105]]
    %v179 = vstv %s178
    %v180 = vmul.f32 %v73, %v179
    %v181 = vadd.f32 %v177, %v180
    %s182 = sld [smem:[#allocation2 + $0x185]]
    %v183 = vstv %s182
    %v184 = vmul.f32 %v75, %v183
    %v185 = vadd.f32 %v181, %v184
    %s186 = sld [smem:[#allocation5 + $0x5]]
    %v187 = vstv %s186
    %v188 = vadd.f32 %v185, %v187
    %v189 = vmax.f32 %v188, 0.0
    %s190 = sld [smem:[#allocation2 + $0x6]]
    %v191 = vstv %s190
    %v192 = vmul.f32 %v69, %v191
    %s193 = sld [smem:[#allocation2 + $0x86]]
    %v194 = vstv %s193
    %v195 = vmul.f32 %v71, %v194
    %v196 = vadd.f32 %v192, %v195
    %s197 = sld [smem:[#allocation2 + $0x106]]
    %v198 = vstv %s197
    %v199 = vmul.f32 %v73, %v198
    %v200 = vadd.f32 %v196, %v199
    %s201 = sld [smem:[#allocation2 + $0x186]]
    %v202 = vstv %s201
    %v203 = vmul.f32 %v75, %v202
    %v204 = vadd.f32 %v200, %v203
    %s205 = sld [smem:[#allocation5 + $0x6]]
    %v206 = vstv %s205
    %v207 = vadd.f32 %v204, %v206
    %v208 = vmax.f32 %v207, 0.0
    %s209 = sld [smem:[#allocation2 + $0x7]]
    %v210 = vstv %s209
    %v211 = vmul.f32 %v69, %v210
    %s212 = sld [smem:[#allocation2 + $0x87]]
    %v213 = vstv %s212
    %v214 = vmul.f32 %v71, %v213
    %v215 = vadd.f32 %v211, %v214
    %s216 = sld [smem:[#allocation2 + $0x107]]
    %v217 = vstv %s216
    %v218 = vmul.f32 %v73, %v217
    %v219 = vadd.f32 %v215, %v218
    %s220 = sld [smem:[#allocation2 + $0x187]]
    %v221 = vstv %s220
    %v222 = vmul.f32 %v75, %v221
    %v223 = vadd.f32 %v219, %v222
    %s224 = sld [smem:[#allocation5 + $0x7]]
    %v225 = vstv %s224
    %v226 = vadd.f32 %v223, %v225
    %v227 = vmax.f32 %v226, 0.0
    %s228 = sld [smem:[#allocation7]]
    %v229 = vstv %s228
    %v230 = vmul.f32 %v94, %v229
    %s231 = sld [smem:[#allocation7 + $0x80]]
    %v232 = vstv %s231
    %v233 = vmul.f32 %v113, %v232
    %v234 = vadd.f32 %v230, %v233
    %s235 = sld [smem:[#allocation7 + $0x100]]
    %v236 = vstv %s235
    %v237 = vmul.f32 %v132, %v236
    %v238 = vadd.f32 %v234, %v237
    %s239 = sld [smem:[#allocation7 + $0x180]]
    %v240 = vstv %s239
    %v241 = vmul.f32 %v151, %v240
    %v242 = vadd.f32 %v238, %v241
    %s243 = sld [smem:[#allocation7 + $0x200]]
    %v244 = vstv %s243
    %v245 = vmul.f32 %v170, %v244
    %v246 = vadd.f32 %v242, %v245
    %s247 = sld [smem:[#allocation7 + $0x280]]
    %v248 = vstv %s247
    %v249 = vmul.f32 %v189, %v248
    %v250 = vadd.f32 %v246, %v249
    %s251 = sld [smem:[#allocation7 + $0x300]]
    %v252 = vstv %s251
    %v253 = vmul.f32 %v208, %v252
    %v254 = vadd.f32 %v250, %v253
    %s255 = sld [smem:[#allocation7 + $0x380]]
    %v256 = vstv %s255
    %v257 = vmul.f32 %v227, %v256
    %v258 = vadd.f32 %v254, %v257
    %s259 = sld [smem:[#allocation8]]
    %v260 = vstv %s259
    %v261 = vadd.f32 %v258, %v260
    %s262 = sld [smem:[#allocation7 + $0x1]]
    %v263 = vstv %s262
    %v264 = vmul.f32 %v94, %v263
    %s265 = sld [smem:[#allocation7 + $0x81]]
    %v266 = vstv %s265
    %v267 = vmul.f32 %v113, %v266
    %v268 = vadd.f32 %v264, %v267
    %s269 = sld [smem:[#allocation7 + $0x101]]
    %v270 = vstv %s269
    %v271 = vmul.f32 %v132, %v270
    %v272 = vadd.f32 %v268, %v271
    %s273 = sld [smem:[#allocation7 + $0x181]]
    %v274 = vstv %s273
    %v275 = vmul.f32 %v151, %v274
    %v276 = vadd.f32 %v272, %v275
    %s277 = sld [smem:[#allocation7 + $0x201]]
    %v278 = vstv %s277
    %v279 = vmul.f32 %v170, %v278
    %v280 = vadd.f32 %v276, %v279
    %s281 = sld [smem:[#allocation7 + $0x281]]
    %v282 = vstv %s281
    %v283 = vmul.f32 %v189, %v282
    %v284 = vadd.f32 %v280, %v283
    %s285 = sld [smem:[#allocation7 + $0x301]]
    %v286 = vstv %s285
    %v287 = vmul.f32 %v208, %v286
    %v288 = vadd.f32 %v284, %v287
    %s289 = sld [smem:[#allocation7 + $0x381]]
    %v290 = vstv %s289
    %v291 = vmul.f32 %v227, %v290
    %v292 = vadd.f32 %v288, %v291
    %s293 = sld [smem:[#allocation8 + $0x1]]
    %v294 = vstv %s293
    %v295 = vadd.f32 %v292, %v294
    %s296 = sld [smem:[#allocation7 + $0x2]]
    %v297 = vstv %s296
    %v298 = vmul.f32 %v94, %v297
    %s299 = sld [smem:[#allocation7 + $0x82]]
    %v300 = vstv %s299
    %v301 = vmul.f32 %v113, %v300
    %v302 = vadd.f32 %v298, %v301
    %s303 = sld [smem:[#allocation7 + $0x102]]
    %v304 = vstv %s303
    %v305 = vmul.f32 %v132, %v304
    %v306 = vadd.f32 %v302, %v305
    %s307 = sld [smem:[#allocation7 + $0x182]]
    %v308 = vstv %s307
    %v309 = vmul.f32 %v151, %v308
    %v310 = vadd.f32 %v306, %v309
    %s311 = sld [smem:[#allocation7 + $0x202]]
    %v312 = vstv %s311
    %v313 = vmul.f32 %v170, %v312
    %v314 = vadd.f32 %v310, %v313
    %s315 = sld [smem:[#allocation7 + $0x282]]
    %v316 = vstv %s315
    %v317 = vmul.f32 %v189, %v316
    %v318 = vadd.f32 %v314, %v317
    %s319 = sld [smem:[#allocation7 + $0x302]]
    %v320 = vstv %s319
    %v321 = vmul.f32 %v208, %v320
    %v322 = vadd.f32 %v318, %v321
    %s323 = sld [smem:[#allocation7 + $0x382]]
    %v324 = vstv %s323
    %v325 = vmul.f32 %v227, %v324
    %v326 = vadd.f32 %v322, %v325
    %s327 = sld [smem:[#allocation8 + $0x2]]
    %v328 = vstv %s327
    %v329 = vadd.f32 %v326, %v328
    %v330 = vmax.f32 %v261, %v295
    %v331 = vmax.f32 %v330, %v329
    %v332 = vsub.f32 %v261, %v331
    %v333 = vsub.f32 %v295, %v331
    %v334 = vsub.f32 %v329, %v331
    %v335 = vmul.f32 %v332, 1.442695
    %v336 = vpow.pop %v335
    %v337 = vmul.f32 %v333, 1.442695
    %v338 = vpow.pop %v337
    %v339 = vadd.f32 %v336, %v338
    %v340 = vmul.f32 %v334, 1.442695
    %v341 = vpow.pop %v340
    %v342 = vadd.f32 %v339, %v341
    %v343 = vlog2.pop %v342
    %v344 = vmul.f32 %v343, 0.6931472
    %v345 = vsub.f32 %v332, %v344
    %346 = vst [vmem:[#allocation10] sm:$0x1] %v345
    %v347 = vsub.f32 %v333, %v344
    %s348 = scalar_lea.vmem [#allocation10], 1
    %349 = vst [vmem:[%s348] sm:$0x1] %v347
    %v350 = vsub.f32 %v334, %v344
    %s351 = scalar_lea.vmem [#allocation10], 2
    %352 = vst [vmem:[%s351] sm:$0x1] %v350
    // Predicated region
    $region38: #{tpu_custom_call.1} parent=1 // pred_check
      _
    $region39: #{tpu_custom_call.1} parent=1 // pred_check_branch
      %354 = sbr.rel (0) target = $region41
    $region40: #{tpu_custom_call.1} parent=1 // pred_region
      %s356 = ssub.s32 48, 48
      %357 = vsyncadd [#allocation3], %s356
      %s358 = sshll.u32 [#allocation10], 4
      %s359 = int_to_ptr.vmem [resolvable:$true] %s358
      %364 = dma.vmem_to_hbm [thread:$0]  %s359, 48, %s5, [#allocation3], 16, 16, 1
    $region41: #{tpu_custom_call.1} parent=1 // pred_fallthru
      _
    // Predicated region
    $region42: #{tpu_custom_call.1} parent=1 // pred_check
      _
    $region43: #{tpu_custom_call.1} parent=1 // pred_check_branch
      %366 = sbr.rel (0) target = $region45
    $region44: #{tpu_custom_call.1} parent=1 // pred_region
      %367 = dma.done [#allocation3], 48
    $region45: #{tpu_custom_call.1} parent=1 // pred_fallthru
      _
    %368 = vsyncpa [#allocation3], 1
    %369 = vsyncpa [#allocation4], 1
    %370 = vsyncpa [#allocation6], 1
    %371 = vsyncpa [#allocation9], 1

</llo_original>
